<compile_context>
chip_gen: v7x
topology: tpu7x:2x2x1
jax: 0.10.0
libtpu: 0.0.40
codegen_flags: <defaults>
</compile_context>

<pallas_src>
import functools

import jax
import jax.numpy as jnp
from jax.experimental import pallas as pl
from jax.experimental.pallas import tpu as pltpu


def _round_up(x, m):
    return (x + m - 1) // m * m


def _vmem_capacity_bytes():
    try:
        return int(pltpu.get_tpu_info().vmem_capacity_bytes)
    except Exception:
        return 64 * 1024 * 1024          # conservative fallback (v7x physical VMEM)


def _per_step_vmem_bytes(bt, s, d, n, dp):
    """Rough per-grid-step VMEM footprint (bytes) of the fused kernel."""
    x_blk = 2 * (bt * s * d) * 2         # bf16 input block, double-buffered
    out_blk = 2 * (bt * s * dp) * 4      # f32 output block, double-buffered
    proj = bt * s * n * 4                # f32 fused-projection result
    qkv = bt * s * n * 2                 # bf16 q/k/v MXU operands
    scores = 2 * bt * s * s * 4          # ~two live (S,S) f32 temporaries
    wts = bt * s * s * 2                 # bf16 attention weights
    return x_blk + out_blk + proj + qkv + scores + wts


def _pick_batch_tile(batch, seq, per_step_fn, budget):
    """Pick Bt = divisor of `batch` such that (a) grid length >= 2 so the
    'parallel' axis can shard across both v7x TensorCores, (b) the per-step
    VMEM footprint fits the budget, (c) Bt*S is a multiple of 256 (MXU M
    alignment) when possible, else the largest fitting tile."""
    max_bt = max(1, batch // 2)
    cands = [d for d in range(1, max_bt + 1) if batch % d == 0]
    fit = [d for d in cands if per_step_fn(d) <= budget] or [1]
    aligned = [d for d in fit if (d * seq) % 256 == 0]
    return max(aligned) if aligned else max(fit)


def self_attention_kernel(x_ref, w_ref, b_ref, o_ref, *, attn_pad, d_pad, scale):
    bt, s, d = x_ref.shape
    ap, dp = attn_pad, d_pad

    # Fused QKV projection: one bf16 (Bt*S, D) @ (D, 2*Ap + Dp) MXU matmul
    # with f32 accumulation, then f32 bias add.
    x2 = x_ref[...].reshape(bt * s, d)                               # bf16
    proj = jnp.dot(x2, w_ref[...],
                   preferred_element_type=jnp.float32) + b_ref[...]

    # Slices land on 128-lane tile boundaries (Ap, Dp are 128 multiples).
    # Scale (1/sqrt(true A)) is folded into q before the scores matmul.
    q = (proj[:, :ap] * scale).reshape(bt, s, ap).astype(jnp.bfloat16)
    k = proj[:, ap:2 * ap].reshape(bt, s, ap).astype(jnp.bfloat16)
    v = proj[:, 2 * ap:].reshape(bt, s, dp).astype(jnp.bfloat16)

    # Scores via transposed-contraction batched matmul (no explicit XLU
    # transpose); bf16 operands, f32 accumulation.
    scores = jnp.einsum('bqd,bkd->bqk', q, k,
                        preferred_element_type=jnp.float32)

    # Numerically stable softmax in f32; reciprocal on the (otherwise idle) EUP.
    # TODO(synk): flash-style KV tiling here for large S (see header comment).
    m = jnp.max(scores, axis=-1, keepdims=True)
    p = jnp.exp(scores - m)
    inv = pl.reciprocal(jnp.sum(p, axis=-1, keepdims=True), approx=True)
    weights = (p * inv).astype(jnp.bfloat16)

    # Attend: bf16 (Bt,S,S) @ (Bt,S,Dp) -> f32, lane-dense output.
    out = jnp.einsum('bqk,bkd->bqd', weights, v,
                     preferred_element_type=jnp.float32)
    o_ref[...] = out.astype(o_ref.dtype)


def fuse_qkv_params(wq, bq, wk, bk, wv, bv):
    """One-time parameter fusion (do at module init, NOT per forward call).

    wq/wk: (D, A); wv: (D, D); biases: (1, out), all nn.Linear weights already
    stored as (in, out). Returns fused bf16 weight (D, 2*Ap + Dp), fused f32
    bias (1, 2*Ap + Dp) and layout metadata. Q/K columns are zero-padded to Ap
    (exact: padded lanes contribute 0 to the scores contraction); V columns
    are zero-padded to Dp (padded output lanes are exactly 0 and sliced off)."""
    D, A = wq.shape
    Ap = _round_up(A, 128)
    Dp = _round_up(D, 128)

    def pad_cols(w, b, width):
        return (jnp.pad(w, ((0, 0), (0, width - w.shape[1]))),
                jnp.pad(b, ((0, 0), (0, width - b.shape[1]))))

    wq_p, bq_p = pad_cols(wq, bq, Ap)
    wk_p, bk_p = pad_cols(wk, bk, Ap)
    wv_p, bv_p = pad_cols(wv, bv, Dp)

    w_fused = jnp.concatenate([wq_p, wk_p, wv_p], axis=1).astype(jnp.bfloat16)
    b_fused = jnp.concatenate([bq_p, bk_p, bv_p], axis=1).astype(jnp.float32)
    return w_fused, b_fused, dict(attn_dim=A, attn_pad=Ap, d_in=D, d_pad=Dp)


def self_attention(x, w_fused, b_fused, meta):
    """x: (B, S, D) -> attended output (B, S, D)."""
    B, S, D = x.shape
    A, Ap, Dp = meta['attn_dim'], meta['attn_pad'], meta['d_pad']
    assert D == meta['d_in']
    N = 2 * Ap + Dp
    assert w_fused.shape == (D, N) and b_fused.shape == (1, N)

    # Generation-aware VMEM planning.
    cap = _vmem_capacity_bytes()
    fixed = 2 * (D * N * 2) + 2 * (N * 4)        # double-buffered W (bf16) + bias (f32)
    per_step = functools.partial(_per_step_vmem_bytes, s=S, d=D, n=N, dp=Dp)
    budget = max(int(0.75 * cap) - fixed, per_step(1))
    Bt = _pick_batch_tile(B, S, per_step, budget)
    grid = (B // Bt,)

    needed = fixed + per_step(Bt)
    vmem_limit = int(min(int(0.9 * cap), max(32 * 1024 * 1024, 2 * needed)))

    kernel = functools.partial(self_attention_kernel,
                               attn_pad=Ap, d_pad=Dp, scale=1.0 / (A ** 0.5))

    flops = (2 * B * S * D * N           # fused projection
             + 2 * B * S * S * Ap        # scores
             + 2 * B * S * S * Dp)       # attend
    cost = pl.CostEstimate(
        flops=flops,
        transcendentals=B * S * S,
        bytes_accessed=(2 * (x.size + w_fused.size) + 4 * b_fused.size
                        + 4 * B * S * Dp),
    )

    x_bf16 = x.astype(jnp.bfloat16)

    out_padded = pl.pallas_call(
        kernel,
        out_shape=jax.ShapeDtypeStruct((B, S, Dp), x.dtype),
        grid_spec=pl.GridSpec(
            grid=grid,
            in_specs=[
                pl.BlockSpec((Bt, S, D), lambda b: (b, 0, 0)),   # x (bf16)
                pl.BlockSpec((D, N), lambda b: (0, 0)),          # fused W (bf16)
                pl.BlockSpec((1, N), lambda b: (0, 0)),          # fused bias (f32)
            ],
            out_specs=pl.BlockSpec((Bt, S, Dp), lambda b: (b, 0, 0)),
        ),
        compiler_params=pltpu.CompilerParams(
            dimension_semantics=("parallel",),
            vmem_limit_bytes=vmem_limit),
        cost_estimate=cost,
    )(x_bf16, w_fused, b_fused)

    # Drop the zero-padded output lanes only when D is not lane-aligned.
    return out_padded if Dp == D else out_padded[..., :D]


if __name__ == "__main__":
    B, S, D_in, ATTN = 2, 8, 32, 128

    key = jax.random.PRNGKey(0)
    kx, kq, kbq, kk, kbk, kvw, kbv = jax.random.split(key, 7)

    x = jax.random.normal(kx, (B, S, D_in), dtype=jnp.float32)

    # nn.Linear-style parameters, stored pre-transposed as (in, out).
    wq = jax.random.normal(kq, (D_in, ATTN), dtype=jnp.float32) * 0.05
    bq = jax.random.normal(kbq, (1, ATTN), dtype=jnp.float32) * 0.05
    wk = jax.random.normal(kk, (D_in, ATTN), dtype=jnp.float32) * 0.05
    bk = jax.random.normal(kbk, (1, ATTN), dtype=jnp.float32) * 0.05
    wv = jax.random.normal(kvw, (D_in, D_in), dtype=jnp.float32) * 0.05
    bv = jax.random.normal(kbv, (1, D_in), dtype=jnp.float32) * 0.05

    # One-time parameter fusion (module-init time, not per forward pass).
    w_fused, b_fused, meta = fuse_qkv_params(wq, bq, wk, bk, wv, bv)

    out = self_attention(x, w_fused, b_fused, meta)
    out = jax.block_until_ready(out)

    # Plain-JAX f32 reference (same math as the PyTorch module).
    q = x @ wq + bq
    k = x @ wk + bk
    v = x @ wv + bv
    scores = jnp.einsum("bqd,bkd->bqk", q, k) / (ATTN ** 0.5)
    ref = jnp.einsum("bqk,bkd->bqd", jax.nn.softmax(scores, axis=-1), v)

    # Tolerance covers bf16 MXU operands + EUP approximate reciprocal.
    assert jnp.allclose(out, ref, atol=2.5e-2, rtol=2.5e-2), "mismatch vs reference"

    print("KERNEL_OK")
</pallas_src>

<mosaic_0001>
module attributes {stable_mosaic.version = 11 : i64} {
  func.func @self_attention_kernel(%arg0: i32, %arg1: memref<1x8x32xbf16, #tpu.memory_space<vmem>>, %arg2: memref<32x384xbf16, #tpu.memory_space<vmem>>, %arg3: memref<1x384xf32, #tpu.memory_space<vmem>>, %arg4: memref<1x8x128xf32, #tpu.memory_space<vmem>>) attributes {dimension_semantics = [#tpu.dimension_semantics<parallel>], iteration_bounds = array<i64: 2>, scalar_prefetch = 0 : i64, scratch_operands = 0 : i64, tpu.core_type = #tpu.core_type<tc>, window_params = [{transform_indices = @transform_0, window_bounds = array<i64: 1, 8, 32>}, {pipeline_mode = #tpu.pipeline_mode<synchronous>, transform_indices = @transform_1, window_bounds = array<i64: 32, 384>}, {pipeline_mode = #tpu.pipeline_mode<synchronous>, transform_indices = @transform_2, window_bounds = array<i64: 1, 384>}, {transform_indices = @transform_3, window_bounds = array<i64: 1, 8, 128>}]} {
    %c0 = arith.constant 0 : index
    %c0_0 = arith.constant 0 : index
    %c0_1 = arith.constant 0 : index
    %0 = vector.load %arg1[%c0, %c0_0, %c0_1] : memref<1x8x32xbf16, #tpu.memory_space<vmem>>, vector<1x8x32xbf16>
    %1 = vector.shape_cast %0 : vector<1x8x32xbf16> to vector<8x32xbf16>
    %c0_2 = arith.constant 0 : index
    %c0_3 = arith.constant 0 : index
    %2 = vector.load %arg2[%c0_2, %c0_3] : memref<32x384xbf16, #tpu.memory_space<vmem>>, vector<32x384xbf16>
    %cst = arith.constant dense<0.000000e+00> : vector<8x384xf32>
    %3 = tpu.matmul %1, %2, %cst {dimension_numbers = #tpu.dot_dimension_numbers<[1], [0], [0], [1], [0, 0, 1, 1], [], []>} : vector<8x32xbf16>, vector<32x384xbf16>, vector<8x384xf32> -> vector<8x384xf32>
    %c0_4 = arith.constant 0 : index
    %c0_5 = arith.constant 0 : index
    %4 = vector.load %arg3[%c0_4, %c0_5] : memref<1x384xf32, #tpu.memory_space<vmem>>, vector<1x384xf32>
    %5 = vector.broadcast %4 : vector<1x384xf32> to vector<8x384xf32>
    %6 = arith.addf %3, %5 : vector<8x384xf32>
    %7 = vector.extract_strided_slice %6 {offsets = [0, 0], sizes = [8, 128], strides = [1, 1]} : vector<8x384xf32> to vector<8x128xf32>
    %cst_6 = arith.constant 0.0883883461 : f32
    %8 = vector.broadcast %cst_6 : f32 to vector<8x128xf32>
    %9 = arith.mulf %7, %8 : vector<8x128xf32>
    %10 = vector.shape_cast %9 : vector<8x128xf32> to vector<1x8x128xf32>
    %11 = arith.truncf %10 : vector<1x8x128xf32> to vector<1x8x128xbf16>
    %12 = vector.extract_strided_slice %6 {offsets = [0, 128], sizes = [8, 128], strides = [1, 1]} : vector<8x384xf32> to vector<8x128xf32>
    %13 = vector.shape_cast %12 : vector<8x128xf32> to vector<1x8x128xf32>
    %14 = arith.truncf %13 : vector<1x8x128xf32> to vector<1x8x128xbf16>
    %15 = vector.extract_strided_slice %6 {offsets = [0, 256], sizes = [8, 128], strides = [1, 1]} : vector<8x384xf32> to vector<8x128xf32>
    %16 = vector.shape_cast %15 : vector<8x128xf32> to vector<1x8x128xf32>
    %17 = arith.truncf %16 : vector<1x8x128xf32> to vector<1x8x128xbf16>
    "tpu.trace_start"() <{level = 10 : i32, message = "bqd,bkd->bqk"}> : () -> ()
    %cst_7 = arith.constant dense<0.000000e+00> : vector<1x8x8xf32>
    %18 = tpu.matmul %11, %14, %cst_7 {dimension_numbers = #tpu.dot_dimension_numbers<[2], [2], [1], [1], [0, 0, 0, 1, 1, 1], [0], [0]>} : vector<1x8x128xbf16>, vector<1x8x128xbf16>, vector<1x8x8xf32> -> vector<1x8x8xf32>
    "tpu.trace_stop"() : () -> ()
    %cst_8 = arith.constant dense<0xFF800000> : vector<1x8xf32>
    %19 = vector.multi_reduction <maximumf>, %18, %cst_8 [2] : vector<1x8x8xf32> to vector<1x8xf32>
    %20 = vector.shape_cast %19 : vector<1x8xf32> to vector<1x8x1xf32>
    %21 = vector.broadcast %20 : vector<1x8x1xf32> to vector<1x8x8xf32>
    %22 = arith.subf %18, %21 : vector<1x8x8xf32>
    %23 = math.exp %22 : vector<1x8x8xf32>
    %cst_9 = arith.constant dense<0.000000e+00> : vector<1x8xf32>
    %24 = vector.multi_reduction <add>, %23, %cst_9 [2] : vector<1x8x8xf32> to vector<1x8xf32>
    %25 = vector.shape_cast %24 : vector<1x8xf32> to vector<1x8x1xf32>
    %26 = tpu.reciprocal %25 {approx = true} : vector<1x8x1xf32> -> vector<1x8x1xf32>
    %27 = vector.broadcast %26 : vector<1x8x1xf32> to vector<1x8x8xf32>
    %28 = arith.mulf %23, %27 : vector<1x8x8xf32>
    %29 = arith.truncf %28 : vector<1x8x8xf32> to vector<1x8x8xbf16>
    "tpu.trace_start"() <{level = 10 : i32, message = "bqk,bkd->bqd"}> : () -> ()
    %cst_10 = arith.constant dense<0.000000e+00> : vector<1x8x128xf32>
    %30 = tpu.matmul %29, %17, %cst_10 {dimension_numbers = #tpu.dot_dimension_numbers<[2], [1], [1], [2], [0, 0, 0, 1, 1, 2], [0], [0]>} : vector<1x8x8xbf16>, vector<1x8x128xbf16>, vector<1x8x128xf32> -> vector<1x8x128xf32>
    "tpu.trace_stop"() : () -> ()
    %c0_11 = arith.constant 0 : index
    %c0_12 = arith.constant 0 : index
    %c0_13 = arith.constant 0 : index
    %31 = vector.load %arg4[%c0_11, %c0_12, %c0_13] : memref<1x8x128xf32, #tpu.memory_space<vmem>>, vector<1x8x128xf32>
    tpu.vector_store %arg4[%c0_11, %c0_12, %c0_13], %30 {strides = array<i32>} : memref<1x8x128xf32, #tpu.memory_space<vmem>>, vector<1x8x128xf32>,
    return
  }
  func.func @transform_0(%arg0: i32) -> (i32, i32, i32) {
    %c0_i32 = arith.constant 0 : i32
    %c0_i32_0 = arith.constant 0 : i32
    %c0_i32_1 = arith.constant 0 : i32
    return %arg0, %c0_i32, %c0_i32_0 : i32, i32, i32
  }
  func.func @transform_1(%arg0: i32) -> (i32, i32) {
    %c0_i32 = arith.constant 0 : i32
    %c0_i32_0 = arith.constant 0 : i32
    %c0_i32_1 = arith.constant 0 : i32
    return %c0_i32, %c0_i32_0 : i32, i32
  }
  func.func @transform_2(%arg0: i32) -> (i32, i32) {
    %c0_i32 = arith.constant 0 : i32
    %c0_i32_0 = arith.constant 0 : i32
    %c0_i32_1 = arith.constant 0 : i32
    return %c0_i32, %c0_i32_0 : i32, i32
  }
  func.func @transform_3(%arg0: i32) -> (i32, i32, i32) {
    %c0_i32 = arith.constant 0 : i32
    %c0_i32_0 = arith.constant 0 : i32
    %c0_i32_1 = arith.constant 0 : i32
    return %arg0, %c0_i32, %c0_i32_0 : i32, i32, i32
  }
}

</mosaic_0001>

<llo_original>
// kernel: tpu_custom_call.1
$region0: #{tpu_custom_call.1}
  #allocation0 [shape = 'u32[]', space=smem, size = 0x4, offset = 0x4, fixed_abs, tag = 'smem constant byte address 0x4 - core index']
  #allocation1 [shape = 'u32[144,128]{1,0:T(1,128)}', space=vmem, size = 0x12000, scoped, tag = 'internal scratch']
  %s0 = inlined_call_operand.hbm [shape: bf16[2,8,32], index: 0, kind: input, shape index: {}]
  %s1 = inlined_call_operand.hbm [shape: bf16[32,384], index: 1, kind: input, shape index: {}]
  %s2 = inlined_call_operand.vmem [shape: f32[1,384], index: 2, kind: input, shape index: {}]
  %s3 = inlined_call_operand.hbm [shape: f32[2,8,128], index: 3, kind: output, shape index: {}]
  %s4 = sld [smem:[#allocation0]]
  $region53: #{tpu_custom_call.1} parent=0
    _
  %s6 = ssub.s32 1, %s4
  %s7 = scalar_select 0, %s6, %s4
  $region1: #{tpu_custom_call.1} parent=0
    #allocation2 [shape = 'u8[4096]{0}', space=vmem, size = 0x1000, scoped, tag = 'input window, operand 0']
    #allocation3 [shape = 's32[2]{0}', space=sflag, size = 0x8, scoped, tag = 'scoped memory for tpu_custom_call.1']
    #allocation4 [shape = 's32[2]{0}', space=sflag, size = 0x8, scoped, tag = 'scoped memory for tpu_custom_call.1']
    #allocation5 [shape = 'u8[24576]{0}', space=vmem, size = 0x6000, scoped, tag = 'input window, operand 1, single buffered']
    #allocation6 [shape = 's32[1]{0}', space=sflag, size = 0x4, scoped, tag = 'scoped memory for tpu_custom_call.1']
    #allocation7 [shape = 'u8[8192]{0}', space=vmem, size = 0x2000, scoped, tag = 'output window, operand 0']
    %8 = vsyncpa [#allocation3], 0
    %s9 = scalar_lea.sflag [#allocation3], 1
    %10 = vsyncpa %s9, 0
    %11 = vsyncpa [#allocation6], 0
    %12 = vsyncpa [#allocation4], 0
    %s13 = scalar_lea.sflag [#allocation4], 1
    %14 = vsyncpa %s13, 0
    loop: start=0, step=1, limit=4
    $region2: #{tpu_custom_call.1} parent=1 // loop_pre_header
      _
    $region3: #{tpu_custom_call.1} parent=1 // loop_header
      %s16 = sphi 0, %s20
      %p17 = scmp.ge.s32.totalorder %s16, 4
      %s26 = sphi 0, %s28
      %s29 = sphi 0, %s26
      %s30 = sphi 0, %s29
      %s46 = sphi 0, %s30
      %s50 = sphi 0, %s50
      %s52 = sphi 0, %s50
      %s53 = sphi 0, %s52
      %s67 = sphi 0, %s53
      %s71 = sphi 0, %s71
      %s73 = sphi 0, %s71
      %s74 = sphi 0, %s73
      %s88 = sphi 0, %s74
      %s94 = sphi 0, %s96
      %s97 = sphi 0, %s94
      %s98 = sphi 0, %s97
      %s114 = sphi 0, %s98
    $region4: #{tpu_custom_call.1} parent=1 // loop_header_branch
      %19 = sbr.rel (%p17) target = $region8
    $region5: #{tpu_custom_call.1} parent=1 // loop_body
      %s21 = ssub.s32 %s16, 1
      %s22 = ssub.s32 %s16, 2
      %s23 = sadd.s32 %s16, 1
      %s24 = ssub.s32 %s16, %s23
      %p25 = scmp.eq.s32.totalorder %s24, 0
      %s27 = sadd.s32 %s26, 1
      %s28 = scalar_select %p25, %s26, %s27
      %p31 = pneg %p25
      %p32 = scmp.eq.s32.totalorder %s16, 1
      %p33 = por %p31, %p32
      %p34 = scmp.ne.s32.totalorder %s26, %s29
      %p35 = scmp.eq.s32.totalorder %s16, 0
      %p36 = por %p34, %p35
      %p37 = scmp.ne.s32.totalorder %s26, %s29
      %p38 = scmp.eq.s32.totalorder %s21, 1
      %p39 = por %p37, %p38
      %p40 = scmp.ne.s32.totalorder %s29, %s30
      %p41 = scmp.eq.s32.totalorder %s21, 0
      %p42 = por %p40, %p41
      %p43 = scmp.ne.s32.totalorder %s29, %s30
      %p44 = scmp.eq.s32.totalorder %s22, 1
      %p45 = por %p43, %p44
      %p47 = scmp.ne.s32.totalorder %s30, %s46
      %p48 = scmp.eq.s32.totalorder %s22, 0
      %p49 = por %p47, %p48
      %s51 = sadd.s32 %s50, 1
      %p54 = scmp.eq.s32.totalorder %s16, 1
      %p55 = scmp.ne.s32.totalorder %s50, %s52
      %p56 = scmp.eq.s32.totalorder %s16, 0
      %p57 = por %p55, %p56
      %p58 = scmp.ne.s32.totalorder %s50, %s52
      %p59 = scmp.eq.s32.totalorder %s21, 1
      %p60 = por %p58, %p59
      %p61 = scmp.ne.s32.totalorder %s52, %s53
      %p62 = scmp.eq.s32.totalorder %s21, 0
      %p63 = por %p61, %p62
      %p64 = scmp.ne.s32.totalorder %s52, %s53
      %p65 = scmp.eq.s32.totalorder %s22, 1
      %p66 = por %p64, %p65
      %p68 = scmp.ne.s32.totalorder %s53, %s67
      %p69 = scmp.eq.s32.totalorder %s22, 0
      %p70 = por %p68, %p69
      %s72 = sadd.s32 %s71, 1
      %p75 = scmp.eq.s32.totalorder %s16, 1
      %p76 = scmp.ne.s32.totalorder %s71, %s73
      %p77 = scmp.eq.s32.totalorder %s16, 0
      %p78 = por %p76, %p77
      %p79 = scmp.ne.s32.totalorder %s71, %s73
      %p80 = scmp.eq.s32.totalorder %s21, 1
      %p81 = por %p79, %p80
      %p82 = scmp.ne.s32.totalorder %s73, %s74
      %p83 = scmp.eq.s32.totalorder %s21, 0
      %p84 = por %p82, %p83
      %p85 = scmp.ne.s32.totalorder %s73, %s74
      %p86 = scmp.eq.s32.totalorder %s22, 1
      %p87 = por %p85, %p86
      %p89 = scmp.ne.s32.totalorder %s74, %s88
      %p90 = scmp.eq.s32.totalorder %s22, 0
      %p91 = por %p89, %p90
      %s92 = ssub.s32 %s16, %s23
      %p93 = scmp.eq.s32.totalorder %s92, 0
      %s95 = sadd.s32 %s94, 1
      %s96 = scalar_select %p93, %s94, %s95
      %p99 = pneg %p93
      %p100 = scmp.eq.s32.totalorder %s16, 1
      %p101 = por %p99, %p100
      %p102 = scmp.ne.s32.totalorder %s94, %s97
      %p103 = scmp.eq.s32.totalorder %s16, 0
      %p104 = por %p102, %p103
      %p105 = scmp.ne.s32.totalorder %s94, %s97
      %p106 = scmp.eq.s32.totalorder %s21, 1
      %p107 = por %p105, %p106
      %p108 = scmp.ne.s32.totalorder %s97, %s98
      %p109 = scmp.eq.s32.totalorder %s21, 0
      %p110 = por %p108, %p109
      %p111 = scmp.ne.s32.totalorder %s97, %s98
      %p112 = scmp.eq.s32.totalorder %s22, 1
      %p113 = por %p111, %p112
      %p115 = scmp.ne.s32.totalorder %s98, %s114
      %p116 = scmp.eq.s32.totalorder %s22, 0
      %p117 = por %p115, %p116
      %p118 = scmp.le.s32.totalorder 1, %s16
      %p119 = scmp.lt.s32.totalorder %s16, 3
      %p120 = pnand %p118, %p119
      %p121 = pneg %p120
      // Predicated region
      $region9: #{tpu_custom_call.1} parent=5 // pred_check
        _
      $region10: #{tpu_custom_call.1} parent=5 // pred_check_branch
        %123 = sbr.rel (%p120) target = $region12
      $region11: #{tpu_custom_call.1} parent=5 // pred_region
        %s124 = ssub.s32 %s16, 1
        // Predicated region
        $region13: #{tpu_custom_call.1} parent=11 // pred_check
          %p125 = pneg %p63
        $region14: #{tpu_custom_call.1} parent=11 // pred_check_branch
          %127 = sbr.rel (%p125) target = $region16
        $region15: #{tpu_custom_call.1} parent=11 // pred_region
          %s129 = ssub.s32 768, 768
          %130 = vsyncadd [#allocation6], %s129
          %s131 = sshll.u32 [#allocation5], 4
          %s132 = int_to_ptr.vmem [resolvable:$true] %s131
          %137 = dma.hbm_to_vmem [thread:$0]  %s1, 768, %s132, [#allocation6], 192, 192, 12
        $region16: #{tpu_custom_call.1} parent=11 // pred_fallthru
          _
        // Predicated region
        $region17: #{tpu_custom_call.1} parent=11 // pred_check
          %p138 = pneg %p84
        $region18: #{tpu_custom_call.1} parent=11 // pred_check_branch
          %140 = sbr.rel (%p138) target = $region20
        $region19: #{tpu_custom_call.1} parent=11 // pred_region
          _
        $region20: #{tpu_custom_call.1} parent=11 // pred_fallthru
          _
      $region12: #{tpu_custom_call.1} parent=5 // pred_fallthru
        _
      %p141 = scmp.lt.s32.totalorder %s16, 2
      // Predicated region
      $region21: #{tpu_custom_call.1} parent=5 // pred_check
        %p142 = pneg %p141
      $region22: #{tpu_custom_call.1} parent=5 // pred_check_branch
        %144 = sbr.rel (%p142) target = $region24
      $region23: #{tpu_custom_call.1} parent=5 // pred_region
        // Predicated region
        $region25: #{tpu_custom_call.1} parent=23 // pred_check
          %p145 = pneg %p36
        $region26: #{tpu_custom_call.1} parent=23 // pred_check_branch
          %147 = sbr.rel (%p145) target = $region28
        $region27: #{tpu_custom_call.1} parent=23 // pred_region
          %s148 = sand.u32 %s26, 1
          %s149 = scalar_lea.sflag [#allocation3], %s148
          %s150 = sand.u32 %s26, 1
          %s151 = smul.addr %s150, 4
          %s152 = scalar_lea.vmem [#allocation2], %s151
          %s154 = ssub.s32 64, 64
          %155 = vsyncadd %s149, %s154
          %s156 = smul.addr %s16, 64
          %s157 = scalar_lea.hbm %s0, %s156
          %s159 = sshll.u32 %s152, 4
          %s160 = int_to_ptr.vmem [resolvable:$true] %s159
          %162 = dma.hbm_to_vmem [thread:$0]  %s157, 64, %s160, %s149
        $region28: #{tpu_custom_call.1} parent=23 // pred_fallthru
          _
      $region24: #{tpu_custom_call.1} parent=5 // pred_fallthru
        _
      %p163 = scmp.le.s32.totalorder 1, %s16
      %p164 = scmp.lt.s32.totalorder %s16, 3
      %p165 = pnand %p163, %p164
      %p166 = pneg %p165
      // Predicated region
      $region29: #{tpu_custom_call.1} parent=5 // pred_check
        _
      $region30: #{tpu_custom_call.1} parent=5 // pred_check_branch
        %168 = sbr.rel (%p165) target = $region32
      $region31: #{tpu_custom_call.1} parent=5 // pred_region
        %s169 = ssub.s32 %s16, 1
        %s170 = sand.u32 %s29, 1
        %s171 = scalar_lea.sflag [#allocation3], %s170
        %s172 = sand.u32 %s29, 1
        %s173 = smul.addr %s172, 4
        %s174 = scalar_lea.vmem [#allocation2], %s173
        // Predicated region
        $region33: #{tpu_custom_call.1} parent=31 // pred_check
          %p175 = pneg %p42
        $region34: #{tpu_custom_call.1} parent=31 // pred_check_branch
          %177 = sbr.rel (%p175) target = $region36
        $region35: #{tpu_custom_call.1} parent=31 // pred_region
          %178 = dma.done %s171, 64
        $region36: #{tpu_custom_call.1} parent=31 // pred_fallthru
          _
        // Predicated region
        $region37: #{tpu_custom_call.1} parent=31 // pred_check
          %p179 = pneg %p63
        $region38: #{tpu_custom_call.1} parent=31 // pred_check_branch
          %181 = sbr.rel (%p179) target = $region40
        $region39: #{tpu_custom_call.1} parent=31 // pred_region
          %182 = dma.done [#allocation6], 768
        $region40: #{tpu_custom_call.1} parent=31 // pred_fallthru
          _
        %s183 = sand.u32 %s29, 1
        %s184 = scalar_lea.sflag [#allocation3], %s183
        %s185 = sand.u32 %s29, 1
        %s186 = smul.addr %s185, 4
        %s187 = scalar_lea.vmem [#allocation2], %s186
        %p188 = pneg %p42
        %p189 = pneg %p39
        %p190 = pneg %p63
        %p191 = pneg %p60
        %p192 = pneg %p84
        %p193 = pneg %p81
        %p194 = pneg %p110
        %p195 = pneg %p107
        %s196 = sand.u32 %s97, 1
        %s197 = scalar_lea.sflag [#allocation4], %s196
        %s198 = sand.u32 %s97, 1
        %s199 = smul.addr %s198, 8
        %s200 = scalar_lea.vmem [#allocation7], %s199
        %v202 = vld [vmem:[%s174] sm:$0xf]
        %v203 = vld [vmem:[#allocation5] sm:$0xff]
        %v204 = vld [vmem:[#allocation5 + $0x8] sm:$0xf]
        %v205 = vld [vmem:[#allocation5 + $0xc] sm:$0xff]
        %v206 = vld [vmem:[#allocation5 + $0x14] sm:$0xf]
        %v207 = vld [vmem:[#allocation5 + $0x18] sm:$0xff]
        %v208 = vld [vmem:[#allocation5 + $0x20] sm:$0xf]
        %v209 = vld [vmem:[#allocation5 + $0x24] sm:$0xff]
        %v210 = vld [vmem:[#allocation5 + $0x2c] sm:$0xf]
        %v211 = vld [vmem:[%s2] sm:$0x7]
        %v213 = vlaneseq
        %v214 = vshrl.u32 %v213, 7
        %v215 = vsub.s32 0, %v214
        %v216 = vrot.slane %v211, %v215
        %v217 = vlaneseq
        %v218 = vshrl.u32 %v217, 7
        %v219 = vsub.s32 1, %v218
        %v220 = vrot.slane %v211, %v219
        %v221 = vlaneseq
        %v222 = vshrl.u32 %v221, 7
        %v223 = vsub.s32 2, %v222
        %v224 = vrot.slane %v211, %v223
        %v236 = vunpack.c.l.b16 %v203
        %v237 = vunpack.c.h.b16 %v203
        %v238 = vunpack.c.l.b16 %v204
        %v239 = vunpack.c.l.b16 %v205
        %v240 = vunpack.c.h.b16 %v205
        %v241 = vunpack.c.l.b16 %v206
        %v242 = vunpack.c.l.b16 %v207
        %v243 = vunpack.c.h.b16 %v207
        %v244 = vunpack.c.l.b16 %v208
        %v245 = vunpack.c.l.b16 %v209
        %v246 = vunpack.c.h.b16 %v209
        %v247 = vunpack.c.l.b16 %v210
        %v248 = vpack.c.b16 %v239, %v236
        %v249 = vpack.c.b16 %v240, %v237
        %v250 = vpack.c.b16 %v241, %v238
        %v251 = vpack.c.b16 %v245, %v242
        %v252 = vpack.c.b16 %v246, %v243
        %v253 = vpack.c.b16 %v247, %v244
        %vm260 = vcmask 261120
        %v262 = vsel %vm260, %v202, 0
        %264 = vmatprep.subr.bf16.mxu0 %v249
        %265 = vmatpush1.bf16.msra.mxu0 %v248
        %266 = vmatprep.subr.bf16.mxu0 %v252
        %267 = vmatpush1.bf16.msra.mxu0 %v251
        %268 = vmatprep.subr.bf16.mxu0 0
        %269 = vmatpush1.bf16.msra.mxu0 0
        %270 = vmatprep.subr.bf16.mxu0 0
        %271 = vmatpush1.bf16.msra.mxu0 0
        %272 = vmatprep.subr.bf16.mxu0 0
        %273 = vmatpush1.bf16.msra.mxu0 0
        %274 = vmatprep.subr.bf16.mxu0 0
        %275 = vmatpush1.bf16.msra.mxu0 0
        %276 = vmatprep.subr.bf16.mxu0 0
        %277 = vmatpush1.bf16.msra.mxu0 0
        %278 = vmatprep.subr.bf16.mxu0 0
        %279 = vmatpush1.bf16.msra.mxu0 0
        %280 = vmatprep.subr.bf16.mxu0 0
        %281 = vmatpush1.bf16.msra.mxu0 0
        %282 = vmatprep.subr.bf16.mxu0 0
        %283 = vmatpush1.bf16.msra.mxu0 0
        %284 = vmatprep.subr.bf16.mxu0 0
        %285 = vmatpush1.bf16.msra.mxu0 0
        %286 = vmatprep.subr.bf16.mxu0 0
        %287 = vmatpush1.bf16.msra.mxu0 0
        %288 = vmatprep.subr.bf16.mxu0 0
        %289 = vmatpush1.bf16.msra.mxu0 0
        %290 = vmatprep.subr.bf16.mxu0 0
        %291 = vmatpush1.bf16.msra.mxu0 0
        %292 = vmatprep.subr.bf16.mxu0 0
        %293 = vmatpush1.bf16.msra.mxu0 0
        %294 = vmatprep.subr.bf16.mxu0 0
        %295 = vmatpush1.bf16.msra.mxu0 0
        %296 = vmatprep.mubr.bf16.mxu0 0
        %297 = vmatmul.mubr.bf16.gmra.mrb[0].mxu0 %v262
        %v298 = vpop.f32.mrb[0].mxu0
        %v299 = vadd.f32 %v216, %v298
        %v300 = vpop.f32.mrb[0].mxu0
        %v301 = vadd.f32 %v220, %v300
        %v302 = vpop.f32.mrb[0].mxu0
        %v303 = vpop.f32.mrb[0].mxu0
        %304 = vdwg.mxu0
        %305 = vmatprep.subr.bf16.mxu0 0
        %306 = vmatpush1.bf16.msra.mxu0 %v250
        %307 = vmatprep.subr.bf16.mxu0 0
        %308 = vmatpush1.bf16.msra.mxu0 %v253
        %309 = vmatprep.subr.bf16.mxu0 0
        %310 = vmatpush1.bf16.msra.mxu0 0
        %311 = vmatprep.subr.bf16.mxu0 0
        %312 = vmatpush1.bf16.msra.mxu0 0
        %313 = vmatprep.subr.bf16.mxu0 0
        %314 = vmatpush1.bf16.msra.mxu0 0
        %315 = vmatprep.subr.bf16.mxu0 0
        %316 = vmatpush1.bf16.msra.mxu0 0
        %317 = vmatprep.subr.bf16.mxu0 0
        %318 = vmatpush1.bf16.msra.mxu0 0
        %319 = vmatprep.subr.bf16.mxu0 0
        %320 = vmatpush1.bf16.msra.mxu0 0
        %321 = vmatprep.subr.bf16.mxu0 0
        %322 = vmatpush1.bf16.msra.mxu0 0
        %323 = vmatprep.subr.bf16.mxu0 0
        %324 = vmatpush1.bf16.msra.mxu0 0
        %325 = vmatprep.subr.bf16.mxu0 0
        %326 = vmatpush1.bf16.msra.mxu0 0
        %327 = vmatprep.subr.bf16.mxu0 0
        %328 = vmatpush1.bf16.msra.mxu0 0
        %329 = vmatprep.subr.bf16.mxu0 0
        %330 = vmatpush1.bf16.msra.mxu0 0
        %331 = vmatprep.subr.bf16.mxu0 0
        %332 = vmatpush1.bf16.msra.mxu0 0
        %333 = vmatprep.subr.bf16.mxu0 0
        %334 = vmatpush1.bf16.msra.mxu0 0
        %335 = vmatprep.subr.bf16.mxu0 0
        %336 = vmatpush1.bf16.msra.mxu0 0
        %337 = vmatprep.mubr.bf16.mxu0 0
        %338 = vmatmul.mubr.bf16.gmra.mrb[0].mxu0 %v262
        %v339 = vpop.f32.mrb[0].mxu0
        %v340 = vadd.f32 %v224, %v339
        %v341 = vpop.f32.mrb[0].mxu0
        %v342 = vpop.f32.mrb[0].mxu0
        %v343 = vpop.f32.mrb[0].mxu0
        %344 = vdwg.mxu0
        %v345 = vmul.f32 %v299, 0.088388346
        %v346 = vpack.c.bf16 %v345, %v345
        %v347 = vpack.c.bf16 %v301, %v301
        %v348 = vpack.c.bf16 %v340, %v340
        %349 = vmatprep.subr.bf16.mxu0 0
        %350 = vmatpush1.bf16.xpose.msra.mxu0 %v347
        %351 = vmatprep.subr.bf16.mxu0 0
        %352 = vmatpush1.bf16.xpose.msra.mxu0 0
        %353 = vmatprep.subr.bf16.mxu0 0
        %354 = vmatpush1.bf16.xpose.msra.mxu0 0
        %355 = vmatprep.subr.bf16.mxu0 0
        %356 = vmatpush1.bf16.xpose.msra.mxu0 0
        %357 = vmatprep.subr.bf16.mxu0 0
        %358 = vmatpush1.bf16.xpose.msra.mxu0 0
        %359 = vmatprep.subr.bf16.mxu0 0
        %360 = vmatpush1.bf16.xpose.msra.mxu0 0
        %361 = vmatprep.subr.bf16.mxu0 0
        %362 = vmatpush1.bf16.xpose.msra.mxu0 0
        %363 = vmatprep.subr.bf16.mxu0 0
        %364 = vmatpush1.bf16.xpose.msra.mxu0 0
        %365 = vmatprep.subr.bf16.mxu0 0
        %366 = vmatpush1.bf16.xpose.msra.mxu0 0
        %367 = vmatprep.subr.bf16.mxu0 0
        %368 = vmatpush1.bf16.xpose.msra.mxu0 0
        %369 = vmatprep.subr.bf16.mxu0 0
        %370 = vmatpush1.bf16.xpose.msra.mxu0 0
        %371 = vmatprep.subr.bf16.mxu0 0
        %372 = vmatpush1.bf16.xpose.msra.mxu0 0
        %373 = vmatprep.subr.bf16.mxu0 0
        %374 = vmatpush1.bf16.xpose.msra.mxu0 0
        %375 = vmatprep.subr.bf16.mxu0 0
        %376 = vmatpush1.bf16.xpose.msra.mxu0 0
        %377 = vmatprep.subr.bf16.mxu0 0
        %378 = vmatpush1.bf16.xpose.msra.mxu0 0
        %379 = vmatprep.subr.bf16.mxu0 0
        %380 = vmatpush1.bf16.xpose.msra.mxu0 0
        %381 = vmatprep.mubr.bf16.mxu0 0
        %382 = vmatmul.mubr.bf16.gmra.mrb[0].mxu0 %v346
        %v383 = vpop.f32.mrb[0].mxu0
        %v384 = vadd.f32 0.0, %v383
        %v385 = vpop.f32.mrb[0].mxu0
        %v386 = vpop.f32.mrb[0].mxu0
        %v387 = vpop.f32.mrb[0].mxu0
        %388 = vdwg.mxu0
        %vm389 = vcmask 64512
        %v390 = vsel %vm389, %v384, -inf
        %391 = vmax.xlane.f32.xlu0 %v390
        %v392 = vpop.xlane.xlu0 %391
        %v393 = vsub.f32 %v384, %v392
        %v394 = vmul.f32 %v393, 1.442695
        %v395 = vpow.pop %v394
        %v396 = vsel %vm389, %v395, 0.0
        %397 = vadd.xlane.f32.xlu0 %v396
        %v398 = vpop.xlane.xlu0 %397
        %v399 = vrcp.pop %v398
        %v400 = vmul.f32 %v395, %v399
        %v401 = vpack.c.bf16 %v400, %v400
        %v403 = vsel %vm389, %v401, 0
        %vm405 = vcmask 1043456
        %v407 = vsel %vm405, %v348, 0
        %409 = vmatprep.subr.bf16.mxu0 0
        %410 = vmatpush1.bf16.msra.mxu0 %v407
        %411 = vmatprep.subr.bf16.mxu0 0
        %412 = vmatpush1.bf16.msra.mxu0 0
        %413 = vmatprep.subr.bf16.mxu0 0
        %414 = vmatpush1.bf16.msra.mxu0 0
        %415 = vmatprep.subr.bf16.mxu0 0
        %416 = vmatpush1.bf16.msra.mxu0 0
        %417 = vmatprep.subr.bf16.mxu0 0
        %418 = vmatpush1.bf16.msra.mxu0 0
        %419 = vmatprep.subr.bf16.mxu0 0
        %420 = vmatpush1.bf16.msra.mxu0 0
        %421 = vmatprep.subr.bf16.mxu0 0
        %422 = vmatpush1.bf16.msra.mxu0 0
        %423 = vmatprep.subr.bf16.mxu0 0
        %424 = vmatpush1.bf16.msra.mxu0 0
        %425 = vmatprep.subr.bf16.mxu0 0
        %426 = vmatpush1.bf16.msra.mxu0 0
        %427 = vmatprep.subr.bf16.mxu0 0
        %428 = vmatpush1.bf16.msra.mxu0 0
        %429 = vmatprep.subr.bf16.mxu0 0
        %430 = vmatpush1.bf16.msra.mxu0 0
        %431 = vmatprep.subr.bf16.mxu0 0
        %432 = vmatpush1.bf16.msra.mxu0 0
        %433 = vmatprep.subr.bf16.mxu0 0
        %434 = vmatpush1.bf16.msra.mxu0 0
        %435 = vmatprep.subr.bf16.mxu0 0
        %436 = vmatpush1.bf16.msra.mxu0 0
        %437 = vmatprep.subr.bf16.mxu0 0
        %438 = vmatpush1.bf16.msra.mxu0 0
        %439 = vmatprep.subr.bf16.mxu0 0
        %440 = vmatpush1.bf16.msra.mxu0 0
        %441 = vmatprep.mubr.bf16.mxu0 0
        %442 = vmatmul.mubr.bf16.gmra.mrb[0].mxu0 %v403
        %v443 = vpop.f32.mrb[0].mxu0
        %v444 = vadd.f32 0.0, %v443
        %v445 = vpop.f32.mrb[0].mxu0
        %v446 = vpop.f32.mrb[0].mxu0
        %v447 = vpop.f32.mrb[0].mxu0
        %448 = vdwg.mxu0
        %449 = vst [vmem:[%s200] sm:$0xff] %v444
        %s450 = sand.u32 %s97, 1
        %s451 = scalar_lea.sflag [#allocation4], %s450
        %s452 = sand.u32 %s97, 1
        %s453 = smul.addr %s452, 8
        %s454 = scalar_lea.vmem [#allocation7], %s453
        // Predicated region
        $region41: #{tpu_custom_call.1} parent=31 // pred_check
          %p455 = pneg %p107
        $region42: #{tpu_custom_call.1} parent=31 // pred_check_branch
          %457 = sbr.rel (%p455) target = $region44
        $region43: #{tpu_custom_call.1} parent=31 // pred_region
          %s459 = ssub.s32 128, 128
          %460 = vsyncadd %s451, %s459
          %s461 = smul.addr %s21, 128
          %s462 = scalar_lea.hbm %s3, %s461
          %s464 = sshll.u32 %s454, 4
          %s465 = int_to_ptr.vmem [resolvable:$true] %s464
          %467 = dma.vmem_to_hbm [thread:$0]  %s465, 128, %s462, %s451
        $region44: #{tpu_custom_call.1} parent=31 // pred_fallthru
          _
      $region32: #{tpu_custom_call.1} parent=5 // pred_fallthru
        _
      %p468 = scmp.le.s32.totalorder 2, %s16
      // Predicated region
      $region45: #{tpu_custom_call.1} parent=5 // pred_check
        %p469 = pneg %p468
      $region46: #{tpu_custom_call.1} parent=5 // pred_check_branch
        %471 = sbr.rel (%p469) target = $region48
      $region47: #{tpu_custom_call.1} parent=5 // pred_region
        %s472 = ssub.s32 %s16, 2
        // Predicated region
        $region49: #{tpu_custom_call.1} parent=47 // pred_check
          %p473 = pneg %p113
        $region50: #{tpu_custom_call.1} parent=47 // pred_check_branch
          %475 = sbr.rel (%p473) target = $region52
        $region51: #{tpu_custom_call.1} parent=47 // pred_region
          %s476 = sand.u32 %s98, 1
          %s477 = scalar_lea.sflag [#allocation4], %s476
          %s478 = sand.u32 %s98, 1
          %s479 = smul.addr %s478, 8
          %s480 = scalar_lea.vmem [#allocation7], %s479
          %481 = dma.done %s477, 128
        $region52: #{tpu_custom_call.1} parent=47 // pred_fallthru
          _
      $region48: #{tpu_custom_call.1} parent=5 // pred_fallthru
        _
    $region6: #{tpu_custom_call.1} parent=1 // loop_footer
      %s20 = sadd.s32 1, %s16
    $region7: #{tpu_custom_call.1} parent=1 // loop_footer_branch
      %15 = sbr.rel target = $region3
    $region8: #{tpu_custom_call.1} parent=1 // loop_exit
      _
    %482 = vsyncpa [#allocation3], 1
    %s483 = scalar_lea.sflag [#allocation3], 1
    %484 = vsyncpa %s483, 1
    %485 = vsyncpa [#allocation6], 1
    %486 = vsyncpa [#allocation4], 1
    %s487 = scalar_lea.sflag [#allocation4], 1
    %488 = vsyncpa %s487, 1

</llo_original>
